<compile_context>
chip_gen: v7x
topology: tpu7x:2x2x1
jax: 0.10.0
libtpu: 0.0.40
codegen_flags: <defaults>
</compile_context>

<pallas_src>
import jax
import jax.numpy as jnp
from jax.experimental import pallas as pl
from jax.experimental.pallas import tpu as pltpu


def _round_up(a, b):
    return (a + b - 1) // b * b


def _highway_kernel(x_ref, x1_ref,
                    w0_ref, b0_ref,
                    w1_ref, b1_ref,
                    wo_ref, bo_ref,
                    o_ref):
    """One row-tile of the highway network.

    x_ref, x1_ref : (TM, D)    input rows (the two tensors to be concatenated)
    w{0,1}_ref    : (2D, 4D)   fused [Wl || Wg] weights, bf16, (in, out) layout
    b{0,1}_ref    : (1, 4D)    fused [bl || bg] biases, f32
    wo_ref        : (2D, D)    output projection weight, bf16
    bo_ref        : (1, D)     output projection bias, f32
    o_ref         : (TM, D)
    """
    d = x_ref.shape[-1]
    d2 = 2 * d

    # Concatenate the two D-wide inputs once, in VMEM (no (N, 2D) HBM round trip).
    xc = jnp.concatenate([x_ref[...], x1_ref[...]], axis=-1).astype(jnp.float32)

    def layer(x_f32, w_ref, b_ref):
        # One fused 128-lane-wide matmul for linear + gate (bf16 MXU, f32 acc).
        hg = jnp.dot(x_f32.astype(jnp.bfloat16), w_ref[...],
                     preferred_element_type=jnp.float32) + b_ref[...]
        # Static lane split of the packed result (lands on the XLU, which has slack).
        h = jnp.maximum(hg[:, :d2], 0.0)          # ReLU half
        g = jax.nn.sigmoid(hg[:, d2:])            # sigmoid gate half (exp on EUP)
        return x_f32 + g * (h - x_f32)            # fused highway combine (f32)

    xc = layer(xc, w0_ref, b0_ref)
    xc = layer(xc, w1_ref, b1_ref)

    out = jnp.dot(xc.astype(jnp.bfloat16), wo_ref[...],
                  preferred_element_type=jnp.float32) + bo_ref[...]
    o_ref[...] = out.astype(o_ref.dtype)


def pack_params(params):
    """One-time weight prep: fuse Wl||Wg per layer and cast weights to bf16.

    Done once (not per forward call) so no per-call cast / HBM rewrite is paid.
    """
    (wl0, bl0, wg0, bg0, wl1, bl1, wg1, bg1, wo, bo) = params
    w0 = jnp.concatenate([wl0, wg0], axis=1).astype(jnp.bfloat16)   # (2D, 4D)
    b0 = jnp.concatenate([bl0, bg0], axis=1).astype(jnp.float32)    # (1, 4D)
    w1 = jnp.concatenate([wl1, wg1], axis=1).astype(jnp.bfloat16)
    b1 = jnp.concatenate([bl1, bg1], axis=1).astype(jnp.float32)
    return (w0, b0, w1, b1, wo.astype(jnp.bfloat16), bo.astype(jnp.float32))


def _highway_xla(x, x1, packed_params):
    """Pure-XLA path with identical numerics (used for small N)."""
    (w0, b0, w1, b1, wo, bo) = packed_params
    d2 = 2 * x.shape[-1]
    xc = jnp.concatenate([x, x1], axis=-1).astype(jnp.float32)
    for w, b in ((w0, b0), (w1, b1)):
        hg = jnp.dot(xc.astype(jnp.bfloat16), w,
                     preferred_element_type=jnp.float32) + b
        h = jnp.maximum(hg[..., :d2], 0.0)
        g = jax.nn.sigmoid(hg[..., d2:])
        xc = xc + g * (h - xc)
    out = jnp.dot(xc.astype(jnp.bfloat16), wo,
                  preferred_element_type=jnp.float32) + bo
    return out.astype(x.dtype)


def highway_net(x, x1, packed_params, *, row_tile=4096, use_pallas=None):
    """x, x1: (seq, batch, D). Returns (seq, batch, D) (eval-mode forward).

    packed_params: output of pack_params().  use_pallas=None -> auto (Pallas only
    once there are enough rows to amortize launch / pipeline-prime cost).
    """
    assert x.shape == x1.shape
    S, B, D = x.shape
    D2, D4 = 2 * D, 4 * D
    N = S * B

    if use_pallas is None:
        use_pallas = N >= 1024
    if not use_pallas:
        return _highway_xla(x, x1, packed_params)

    x_rows = x.reshape(N, D)
    x1_rows = x1.reshape(N, D)

    # Row tile: as large as possible (amortizes the ~0.35us per-step pipeline cost
    # and fills the MXU), but capped so grid_m >= 2 when N allows it (the row grid
    # axis is "parallel", so it shards across v7x's 2 TensorCores).  4096 is a
    # multiple of 256 (v6e/v7x MXU) and of 128 (v5e MXU).
    if N >= 512:
        tm_cap = _round_up(pl.cdiv(N, 2), 256)
    else:
        tm_cap = _round_up(N, 8)
    tm = max(8, min(_round_up(row_tile, 8), tm_cap))
    grid_m = pl.cdiv(N, tm)   # ragged last tile handled by Pallas block clipping

    (w0, b0, w1, b1, wo, bo) = packed_params

    row_spec = pl.BlockSpec((tm, D), lambda i: (i, 0))
    out_spec = pl.BlockSpec((tm, D), lambda i: (i, 0))
    # Weights / biases are small and grid-invariant: a constant index_map keeps
    # them resident in VMEM (fetched once, never re-DMA'd across the row grid).
    w_spec = pl.BlockSpec((D2, D4), lambda i: (0, 0))
    b_spec = pl.BlockSpec((1, D4), lambda i: (0, 0))
    wo_spec = pl.BlockSpec((D2, D), lambda i: (0, 0))
    bo_spec = pl.BlockSpec((1, D), lambda i: (0, 0))

    itemsize = x.dtype.itemsize
    weight_bytes = (2 * D2 * D4 + D2 * D) * 2 + (2 * D4 + D) * 4   # bf16 W + f32 b
    cost = pl.CostEstimate(
        flops=int(N * (2 * 2 * D2 * D4 + 2 * D2 * D) + N * 8 * D2),
        transcendentals=int(N * 2 * D2),                            # sigmoid exps
        bytes_accessed=int(N * 3 * D * itemsize + weight_bytes),
    )

    out = pl.pallas_call(
        _highway_kernel,
        out_shape=jax.ShapeDtypeStruct((N, D), x.dtype),
        grid_spec=pltpu.PrefetchScalarGridSpec(
            num_scalar_prefetch=0,
            grid=(grid_m,),
            in_specs=[row_spec, row_spec,
                      w_spec, b_spec,
                      w_spec, b_spec,
                      wo_spec, bo_spec],
            out_specs=out_spec,
        ),
        compiler_params=pltpu.CompilerParams(
            dimension_semantics=("parallel",),
        ),
        cost_estimate=cost,
    )(x_rows, x1_rows, w0, b0, w1, b1, wo, bo)

    return out.reshape(S, B, D)


def init_params(key, D, dtype=jnp.float32):
    """Deterministic synthetic parameters matching nn.Linear shapes.

    PyTorch nn.Linear(in, out) stores weight (out, in); we store the transpose
    (in, out) so the kernel computes x @ W + b directly.
    """
    D2 = 2 * D
    keys = jax.random.split(key, 10)

    def lin(kw, kb, fan_in, fan_out):
        bound = 1.0 / (fan_in ** 0.5)
        w = jax.random.uniform(kw, (fan_in, fan_out), dtype, -bound, bound)
        b = jax.random.uniform(kb, (1, fan_out), dtype, -bound, bound)
        return w, b

    wl0, bl0 = lin(keys[0], keys[1], D2, D2)
    wg0, bg0 = lin(keys[2], keys[3], D2, D2)
    wl1, bl1 = lin(keys[4], keys[5], D2, D2)
    wg1, bg1 = lin(keys[6], keys[7], D2, D2)
    wo, bo = lin(keys[8], keys[9], D2, D)
    return (wl0, bl0, wg0, bg0, wl1, bl1, wg1, bg1, wo, bo)


def highway_net_ref(x, x1, params, matmul_dtype=None):
    """Pure-JAX reference of the PyTorch forward (eval mode).

    matmul_dtype=jnp.bfloat16 emulates the kernel's bf16 MXU operands
    (bf16-rounded inputs/weights, f32 accumulation) for a tight check.
    """
    (wl0, bl0, wg0, bg0, wl1, bl1, wg1, bg1, wo, bo) = params

    def mm(a, w):
        if matmul_dtype is not None:
            a = a.astype(matmul_dtype).astype(jnp.float32)
            w = w.astype(matmul_dtype).astype(jnp.float32)
        return jnp.dot(a, w, preferred_element_type=jnp.float32)

    xc = jnp.concatenate([x, x1], axis=-1).astype(jnp.float32)
    for wl, bl, wg, bg in ((wl0, bl0, wg0, bg0), (wl1, bl1, wg1, bg1)):
        h = jax.nn.relu(mm(xc, wl) + bl)
        g = jax.nn.sigmoid(mm(xc, wg) + bg)
        xc = g * h + (1.0 - g) * xc
    return (mm(xc, wo) + bo).astype(x.dtype)


if __name__ == "__main__":
    # Small shapes implied by the forward: seq=8, batch=2, encoder_embed_dim=32.
    S, B, D = 8, 2, 32
    key = jax.random.PRNGKey(0)
    kx, kx1, kp = jax.random.split(key, 3)

    x = jax.random.normal(kx, (S, B, D), jnp.float32)
    x1 = jax.random.normal(kx1, (S, B, D), jnp.float32)
    params = init_params(kp, D)
    packed = pack_params(params)   # one-time bf16 packing / fusion

    # Force the Pallas path at these tiny test shapes (auto mode would take the
    # small-N XLA fallback below ~1024 rows).
    out = jax.block_until_ready(highway_net(x, x1, packed, use_pallas=True))
    assert out.shape == (S, B, D)

    # Tight check vs. a reference that emulates the kernel's bf16 MXU operands.
    ref_bf16 = highway_net_ref(x, x1, params, matmul_dtype=jnp.bfloat16)
    assert jnp.allclose(out, ref_bf16, atol=1e-3, rtol=1e-3), \
        "mismatch vs bf16-emulating reference"

    # Looser check vs. the pure-f32 module semantics (bf16 matmul rounding only).
    ref_f32 = highway_net_ref(x, x1, params)
    assert jnp.allclose(out, ref_f32, atol=3e-2, rtol=3e-2), \
        "mismatch vs f32 reference"

    # Small-N XLA fallback path agrees with the kernel.
    out_xla = jax.block_until_ready(highway_net(x, x1, packed, use_pallas=False))
    assert jnp.allclose(out, out_xla, atol=1e-3, rtol=1e-3), \
        "mismatch between Pallas path and XLA fallback"

    print("KERNEL_OK")
</pallas_src>

<mosaic_0001>
module attributes {stable_mosaic.version = 11 : i64} {
  func.func @_highway_kernel(%arg0: i32, %arg1: memref<16x32xf32, #tpu.memory_space<vmem>>, %arg2: memref<16x32xf32, #tpu.memory_space<vmem>>, %arg3: memref<64x128xbf16, #tpu.memory_space<vmem>>, %arg4: memref<1x128xf32, #tpu.memory_space<vmem>>, %arg5: memref<64x128xbf16, #tpu.memory_space<vmem>>, %arg6: memref<1x128xf32, #tpu.memory_space<vmem>>, %arg7: memref<64x32xbf16, #tpu.memory_space<vmem>>, %arg8: memref<1x32xf32, #tpu.memory_space<vmem>>, %arg9: memref<16x32xf32, #tpu.memory_space<vmem>>) attributes {dimension_semantics = [#tpu.dimension_semantics<parallel>], iteration_bounds = array<i64: 1>, scalar_prefetch = 0 : i64, scratch_operands = 0 : i64, tpu.core_type = #tpu.core_type<tc>, window_params = [{transform_indices = @transform_0, window_bounds = array<i64: 16, 32>}, {transform_indices = @transform_1, window_bounds = array<i64: 16, 32>}, {pipeline_mode = #tpu.pipeline_mode<synchronous>, transform_indices = @transform_2, window_bounds = array<i64: 64, 128>}, {pipeline_mode = #tpu.pipeline_mode<synchronous>, transform_indices = @transform_3, window_bounds = array<i64: 1, 128>}, {pipeline_mode = #tpu.pipeline_mode<synchronous>, transform_indices = @transform_4, window_bounds = array<i64: 64, 128>}, {pipeline_mode = #tpu.pipeline_mode<synchronous>, transform_indices = @transform_5, window_bounds = array<i64: 1, 128>}, {pipeline_mode = #tpu.pipeline_mode<synchronous>, transform_indices = @transform_6, window_bounds = array<i64: 64, 32>}, {pipeline_mode = #tpu.pipeline_mode<synchronous>, transform_indices = @transform_7, window_bounds = array<i64: 1, 32>}, {transform_indices = @transform_8, window_bounds = array<i64: 16, 32>}]} {
    %c0 = arith.constant 0 : index
    %c0_0 = arith.constant 0 : index
    %0 = vector.load %arg1[%c0, %c0_0] : memref<16x32xf32, #tpu.memory_space<vmem>>, vector<16x32xf32>
    %c0_1 = arith.constant 0 : index
    %c0_2 = arith.constant 0 : index
    %1 = vector.load %arg2[%c0_1, %c0_2] : memref<16x32xf32, #tpu.memory_space<vmem>>, vector<16x32xf32>
    %2 = tpu.concatenate %0, %1 in 1 : vector<16x32xf32>, vector<16x32xf32> -> vector<16x64xf32>
    %3 = arith.truncf %2 : vector<16x64xf32> to vector<16x64xbf16>
    %c0_3 = arith.constant 0 : index
    %c0_4 = arith.constant 0 : index
    %4 = vector.load %arg3[%c0_3, %c0_4] : memref<64x128xbf16, #tpu.memory_space<vmem>>, vector<64x128xbf16>
    %cst = arith.constant dense<0.000000e+00> : vector<16x128xf32>
    %5 = tpu.matmul %3, %4, %cst {dimension_numbers = #tpu.dot_dimension_numbers<[1], [0], [0], [1], [0, 0, 1, 1], [], []>} : vector<16x64xbf16>, vector<64x128xbf16>, vector<16x128xf32> -> vector<16x128xf32>
    %c0_5 = arith.constant 0 : index
    %c0_6 = arith.constant 0 : index
    %6 = vector.load %arg4[%c0_5, %c0_6] : memref<1x128xf32, #tpu.memory_space<vmem>>, vector<1x128xf32>
    %7 = vector.broadcast %6 : vector<1x128xf32> to vector<16x128xf32>
    %8 = arith.addf %5, %7 : vector<16x128xf32>
    %9 = vector.extract_strided_slice %8 {offsets = [0, 0], sizes = [16, 64], strides = [1, 1]} : vector<16x128xf32> to vector<16x64xf32>
    %cst_7 = arith.constant 0.000000e+00 : f32
    %10 = vector.broadcast %cst_7 : f32 to vector<16x64xf32>
    %11 = arith.maximumf %9, %10 : vector<16x64xf32>
    %12 = vector.extract_strided_slice %8 {offsets = [0, 64], sizes = [16, 64], strides = [1, 1]} : vector<16x128xf32> to vector<16x64xf32>
    %13 = arith.negf %12 : vector<16x64xf32>
    %14 = math.exp %13 : vector<16x64xf32>
    %cst_8 = arith.constant 1.000000e+00 : f32
    %15 = vector.broadcast %cst_8 : f32 to vector<16x64xf32>
    %16 = arith.addf %15, %14 : vector<16x64xf32>
    %17 = arith.divf %15, %16 : vector<16x64xf32>
    %18 = arith.subf %11, %2 : vector<16x64xf32>
    %19 = arith.mulf %17, %18 : vector<16x64xf32>
    %20 = arith.addf %2, %19 : vector<16x64xf32>
    %21 = arith.truncf %20 : vector<16x64xf32> to vector<16x64xbf16>
    %c0_9 = arith.constant 0 : index
    %c0_10 = arith.constant 0 : index
    %22 = vector.load %arg5[%c0_9, %c0_10] : memref<64x128xbf16, #tpu.memory_space<vmem>>, vector<64x128xbf16>
    %cst_11 = arith.constant dense<0.000000e+00> : vector<16x128xf32>
    %23 = tpu.matmul %21, %22, %cst_11 {dimension_numbers = #tpu.dot_dimension_numbers<[1], [0], [0], [1], [0, 0, 1, 1], [], []>} : vector<16x64xbf16>, vector<64x128xbf16>, vector<16x128xf32> -> vector<16x128xf32>
    %c0_12 = arith.constant 0 : index
    %c0_13 = arith.constant 0 : index
    %24 = vector.load %arg6[%c0_12, %c0_13] : memref<1x128xf32, #tpu.memory_space<vmem>>, vector<1x128xf32>
    %25 = vector.broadcast %24 : vector<1x128xf32> to vector<16x128xf32>
    %26 = arith.addf %23, %25 : vector<16x128xf32>
    %27 = vector.extract_strided_slice %26 {offsets = [0, 0], sizes = [16, 64], strides = [1, 1]} : vector<16x128xf32> to vector<16x64xf32>
    %cst_14 = arith.constant 0.000000e+00 : f32
    %28 = vector.broadcast %cst_14 : f32 to vector<16x64xf32>
    %29 = arith.maximumf %27, %28 : vector<16x64xf32>
    %30 = vector.extract_strided_slice %26 {offsets = [0, 64], sizes = [16, 64], strides = [1, 1]} : vector<16x128xf32> to vector<16x64xf32>
    %31 = arith.negf %30 : vector<16x64xf32>
    %32 = math.exp %31 : vector<16x64xf32>
    %cst_15 = arith.constant 1.000000e+00 : f32
    %33 = vector.broadcast %cst_15 : f32 to vector<16x64xf32>
    %34 = arith.addf %33, %32 : vector<16x64xf32>
    %35 = arith.divf %33, %34 : vector<16x64xf32>
    %36 = arith.subf %29, %20 : vector<16x64xf32>
    %37 = arith.mulf %35, %36 : vector<16x64xf32>
    %38 = arith.addf %20, %37 : vector<16x64xf32>
    %39 = arith.truncf %38 : vector<16x64xf32> to vector<16x64xbf16>
    %c0_16 = arith.constant 0 : index
    %c0_17 = arith.constant 0 : index
    %40 = vector.load %arg7[%c0_16, %c0_17] : memref<64x32xbf16, #tpu.memory_space<vmem>>, vector<64x32xbf16>
    %cst_18 = arith.constant dense<0.000000e+00> : vector<16x32xf32>
    %41 = tpu.matmul %39, %40, %cst_18 {dimension_numbers = #tpu.dot_dimension_numbers<[1], [0], [0], [1], [0, 0, 1, 1], [], []>} : vector<16x64xbf16>, vector<64x32xbf16>, vector<16x32xf32> -> vector<16x32xf32>
    %c0_19 = arith.constant 0 : index
    %c0_20 = arith.constant 0 : index
    %42 = vector.load %arg8[%c0_19, %c0_20] : memref<1x32xf32, #tpu.memory_space<vmem>>, vector<1x32xf32>
    %43 = vector.broadcast %42 : vector<1x32xf32> to vector<16x32xf32>
    %44 = arith.addf %41, %43 : vector<16x32xf32>
    %c0_21 = arith.constant 0 : index
    %c0_22 = arith.constant 0 : index
    %45 = vector.load %arg9[%c0_21, %c0_22] : memref<16x32xf32, #tpu.memory_space<vmem>>, vector<16x32xf32>
    tpu.vector_store %arg9[%c0_21, %c0_22], %44 {strides = array<i32>} : memref<16x32xf32, #tpu.memory_space<vmem>>, vector<16x32xf32>,
    return
  }
  func.func @transform_0(%arg0: i32) -> (i32, i32) {
    %c0_i32 = arith.constant 0 : i32
    %c0_i32_0 = arith.constant 0 : i32
    return %arg0, %c0_i32 : i32, i32
  }
  func.func @transform_1(%arg0: i32) -> (i32, i32) {
    %c0_i32 = arith.constant 0 : i32
    %c0_i32_0 = arith.constant 0 : i32
    return %arg0, %c0_i32 : i32, i32
  }
  func.func @transform_2(%arg0: i32) -> (i32, i32) {
    %c0_i32 = arith.constant 0 : i32
    %c0_i32_0 = arith.constant 0 : i32
    %c0_i32_1 = arith.constant 0 : i32
    return %c0_i32, %c0_i32_0 : i32, i32
  }
  func.func @transform_3(%arg0: i32) -> (i32, i32) {
    %c0_i32 = arith.constant 0 : i32
    %c0_i32_0 = arith.constant 0 : i32
    %c0_i32_1 = arith.constant 0 : i32
    return %c0_i32, %c0_i32_0 : i32, i32
  }
  func.func @transform_4(%arg0: i32) -> (i32, i32) {
    %c0_i32 = arith.constant 0 : i32
    %c0_i32_0 = arith.constant 0 : i32
    %c0_i32_1 = arith.constant 0 : i32
    return %c0_i32, %c0_i32_0 : i32, i32
  }
  func.func @transform_5(%arg0: i32) -> (i32, i32) {
    %c0_i32 = arith.constant 0 : i32
    %c0_i32_0 = arith.constant 0 : i32
    %c0_i32_1 = arith.constant 0 : i32
    return %c0_i32, %c0_i32_0 : i32, i32
  }
  func.func @transform_6(%arg0: i32) -> (i32, i32) {
    %c0_i32 = arith.constant 0 : i32
    %c0_i32_0 = arith.constant 0 : i32
    %c0_i32_1 = arith.constant 0 : i32
    return %c0_i32, %c0_i32_0 : i32, i32
  }
  func.func @transform_7(%arg0: i32) -> (i32, i32) {
    %c0_i32 = arith.constant 0 : i32
    %c0_i32_0 = arith.constant 0 : i32
    %c0_i32_1 = arith.constant 0 : i32
    return %c0_i32, %c0_i32_0 : i32, i32
  }
  func.func @transform_8(%arg0: i32) -> (i32, i32) {
    %c0_i32 = arith.constant 0 : i32
    %c0_i32_0 = arith.constant 0 : i32
    return %arg0, %c0_i32 : i32, i32
  }
}

</mosaic_0001>

<llo_original>
// kernel: tpu_custom_call.1
$region0: #{tpu_custom_call.1}
  #allocation0 [shape = 'u32[]', space=smem, size = 0x4, offset = 0x4, fixed_abs, tag = 'smem constant byte address 0x4 - core index']
  #allocation1 [shape = 'u32[144,128]{1,0:T(1,128)}', space=vmem, size = 0x12000, scoped, tag = 'internal scratch']
  %s0 = inlined_call_operand.vmem [shape: f32[16,32], index: 0, kind: input, shape index: {}]
  %s1 = inlined_call_operand.hbm [shape: f32[16,32], index: 1, kind: input, shape index: {}]
  %s2 = inlined_call_operand.vmem [shape: bf16[64,128], index: 2, kind: input, shape index: {}]
  %s3 = inlined_call_operand.vmem [shape: f32[1,128], index: 3, kind: input, shape index: {}]
  %s4 = inlined_call_operand.hbm [shape: bf16[64,128], index: 4, kind: input, shape index: {}]
  %s5 = inlined_call_operand.vmem [shape: f32[1,128], index: 5, kind: input, shape index: {}]
  %s6 = inlined_call_operand.vmem [shape: bf16[64,32], index: 6, kind: input, shape index: {}]
  %s7 = inlined_call_operand.vmem [shape: f32[1,32], index: 7, kind: input, shape index: {}]
  %s8 = inlined_call_operand.hbm [shape: f32[16,32], index: 8, kind: output, shape index: {}]
  %s9 = sld [smem:[#allocation0]]
  $region50: #{tpu_custom_call.1} parent=0
    _
  %s11 = ssub.s32 1, %s9
  %s12 = scalar_select 0, %s11, %s9
  $region1: #{tpu_custom_call.1} parent=0
    #allocation2 [shape = 'u8[8192]{0}', space=vmem, size = 0x2000, scoped, tag = 'input window, operand 1, single buffered']
    #allocation3 [shape = 's32[1]{0}', space=sflag, size = 0x4, scoped, tag = 'scoped memory for tpu_custom_call.1']
    #allocation4 [shape = 's32[1]{0}', space=sflag, size = 0x4, scoped, tag = 'scoped memory for tpu_custom_call.1']
    #allocation5 [shape = 'u8[16384]{0}', space=vmem, size = 0x4000, scoped, tag = 'input window, operand 4, single buffered']
    #allocation6 [shape = 's32[1]{0}', space=sflag, size = 0x4, scoped, tag = 'scoped memory for tpu_custom_call.1']
    #allocation7 [shape = 'u8[8192]{0}', space=vmem, size = 0x2000, scoped, tag = 'output window, operand 0, single buffered']
    %13 = vsyncpa [#allocation3], 0
    %14 = vsyncpa [#allocation6], 0
    %15 = vsyncpa [#allocation4], 0
    // Predicated region
    $region2: #{tpu_custom_call.1} parent=1 // pred_check
      _
    $region3: #{tpu_custom_call.1} parent=1 // pred_check_branch
      %17 = sbr.rel (0) target = $region5
    $region4: #{tpu_custom_call.1} parent=1 // pred_region
      _
    $region5: #{tpu_custom_call.1} parent=1 // pred_fallthru
      _
    // Predicated region
    $region6: #{tpu_custom_call.1} parent=1 // pred_check
      _
    $region7: #{tpu_custom_call.1} parent=1 // pred_check_branch
      %19 = sbr.rel (0) target = $region9
    $region8: #{tpu_custom_call.1} parent=1 // pred_region
      %s21 = ssub.s32 256, 256
      %22 = vsyncadd [#allocation3], %s21
      %s23 = sshll.u32 [#allocation2], 4
      %s24 = int_to_ptr.vmem [resolvable:$true] %s23
      %29 = dma.hbm_to_vmem [thread:$0]  %s1, 256, %s24, [#allocation3], 128, 128, 8
    $region9: #{tpu_custom_call.1} parent=1 // pred_fallthru
      _
    // Predicated region
    $region10: #{tpu_custom_call.1} parent=1 // pred_check
      _
    $region11: #{tpu_custom_call.1} parent=1 // pred_check_branch
      %31 = sbr.rel (0) target = $region13
    $region12: #{tpu_custom_call.1} parent=1 // pred_region
      _
    $region13: #{tpu_custom_call.1} parent=1 // pred_fallthru
      _
    // Predicated region
    $region14: #{tpu_custom_call.1} parent=1 // pred_check
      _
    $region15: #{tpu_custom_call.1} parent=1 // pred_check_branch
      %33 = sbr.rel (0) target = $region17
    $region16: #{tpu_custom_call.1} parent=1 // pred_region
      _
    $region17: #{tpu_custom_call.1} parent=1 // pred_fallthru
      _
    // Predicated region
    $region18: #{tpu_custom_call.1} parent=1 // pred_check
      _
    $region19: #{tpu_custom_call.1} parent=1 // pred_check_branch
      %35 = sbr.rel (0) target = $region21
    $region20: #{tpu_custom_call.1} parent=1 // pred_region
      %s37 = ssub.s32 512, 512
      %38 = vsyncadd [#allocation6], %s37
      %s39 = sshll.u32 [#allocation5], 4
      %s40 = int_to_ptr.vmem [resolvable:$true] %s39
      %45 = dma.hbm_to_vmem [thread:$0]  %s4, 512, %s40, [#allocation6], 64, 64, 4
    $region21: #{tpu_custom_call.1} parent=1 // pred_fallthru
      _
    // Predicated region
    $region22: #{tpu_custom_call.1} parent=1 // pred_check
      _
    $region23: #{tpu_custom_call.1} parent=1 // pred_check_branch
      %47 = sbr.rel (0) target = $region25
    $region24: #{tpu_custom_call.1} parent=1 // pred_region
      _
    $region25: #{tpu_custom_call.1} parent=1 // pred_fallthru
      _
    // Predicated region
    $region26: #{tpu_custom_call.1} parent=1 // pred_check
      _
    $region27: #{tpu_custom_call.1} parent=1 // pred_check_branch
      %49 = sbr.rel (0) target = $region29
    $region28: #{tpu_custom_call.1} parent=1 // pred_region
      _
    $region29: #{tpu_custom_call.1} parent=1 // pred_fallthru
      _
    // Predicated region
    $region30: #{tpu_custom_call.1} parent=1 // pred_check
      _
    $region31: #{tpu_custom_call.1} parent=1 // pred_check_branch
      %51 = sbr.rel (0) target = $region33
    $region32: #{tpu_custom_call.1} parent=1 // pred_region
      _
    $region33: #{tpu_custom_call.1} parent=1 // pred_fallthru
      _
    // Predicated region
    $region34: #{tpu_custom_call.1} parent=1 // pred_check
      _
    $region35: #{tpu_custom_call.1} parent=1 // pred_check_branch
      %53 = sbr.rel (0) target = $region37
    $region36: #{tpu_custom_call.1} parent=1 // pred_region
      %54 = dma.done [#allocation3], 256
    $region37: #{tpu_custom_call.1} parent=1 // pred_fallthru
      _
    // Predicated region
    $region38: #{tpu_custom_call.1} parent=1 // pred_check
      _
    $region39: #{tpu_custom_call.1} parent=1 // pred_check_branch
      %56 = sbr.rel (0) target = $region41
    $region40: #{tpu_custom_call.1} parent=1 // pred_region
      %57 = dma.done [#allocation6], 512
    $region41: #{tpu_custom_call.1} parent=1 // pred_fallthru
      _
    %v59 = vld [vmem:[%s0] sm:$0xff]
    %v60 = vld [vmem:[%s0 + $0x8] sm:$0xff]
    %v61 = vld [vmem:[#allocation2] sm:$0xff]
    %v62 = vld [vmem:[#allocation2 + $0x8] sm:$0xff]
    %65 = vrot.lane.b32.xlu0 %v61, 32
    %v66 = vpop.permute.xlu0 %65
    %67 = vrot.lane.b32.xlu0 %v62, 32
    %v68 = vpop.permute.xlu0 %67
    %vm71 = vcmask 261120
    %v72 = vsel %vm71, %v59, %v66
    %v73 = vsel %vm71, %v60, %v68
    %v74 = vpack.c.bf16 %v73, %v72
    %v75 = vld [vmem:[%s2] sm:$0xf]
    %v76 = vld [vmem:[%s2 + $0x4] sm:$0xf]
    %v77 = vld [vmem:[%s2 + $0x8] sm:$0xf]
    %v78 = vld [vmem:[%s2 + $0xc] sm:$0xf]
    %v79 = vld [vmem:[%s2 + $0x10] sm:$0xf]
    %v80 = vld [vmem:[%s2 + $0x14] sm:$0xf]
    %v81 = vld [vmem:[%s2 + $0x18] sm:$0xf]
    %v82 = vld [vmem:[%s2 + $0x1c] sm:$0xf]
    %v83 = vld [vmem:[%s3] sm:$0x1]
    %v85 = vlaneseq
    %v86 = vshrl.u32 %v85, 7
    %v87 = vsub.s32 0, %v86
    %v88 = vrot.slane %v83, %v87
    %v98 = vunpack.c.l.b16 %v75
    %v99 = vunpack.c.l.b16 %v76
    %v100 = vunpack.c.l.b16 %v77
    %v101 = vunpack.c.l.b16 %v78
    %v102 = vunpack.c.l.b16 %v79
    %v103 = vunpack.c.l.b16 %v80
    %v104 = vunpack.c.l.b16 %v81
    %v105 = vunpack.c.l.b16 %v82
    %v106 = vpack.c.b16 %v99, %v98
    %v107 = vpack.c.b16 %v101, %v100
    %v108 = vpack.c.b16 %v103, %v102
    %v109 = vpack.c.b16 %v105, %v104
    %vm114 = vcmask 523264
    %v116 = vsel %vm114, %v74, 0
    %118 = vmatprep.subr.bf16.mxu0 0
    %119 = vmatpush1.bf16.msra.mxu0 %v106
    %120 = vmatprep.subr.bf16.mxu0 0
    %121 = vmatpush1.bf16.msra.mxu0 %v107
    %122 = vmatprep.subr.bf16.mxu0 0
    %123 = vmatpush1.bf16.msra.mxu0 %v108
    %124 = vmatprep.subr.bf16.mxu0 0
    %125 = vmatpush1.bf16.msra.mxu0 %v109
    %126 = vmatprep.subr.bf16.mxu0 0
    %127 = vmatpush1.bf16.msra.mxu0 0
    %128 = vmatprep.subr.bf16.mxu0 0
    %129 = vmatpush1.bf16.msra.mxu0 0
    %130 = vmatprep.subr.bf16.mxu0 0
    %131 = vmatpush1.bf16.msra.mxu0 0
    %132 = vmatprep.subr.bf16.mxu0 0
    %133 = vmatpush1.bf16.msra.mxu0 0
    %134 = vmatprep.subr.bf16.mxu0 0
    %135 = vmatpush1.bf16.msra.mxu0 0
    %136 = vmatprep.subr.bf16.mxu0 0
    %137 = vmatpush1.bf16.msra.mxu0 0
    %138 = vmatprep.subr.bf16.mxu0 0
    %139 = vmatpush1.bf16.msra.mxu0 0
    %140 = vmatprep.subr.bf16.mxu0 0
    %141 = vmatpush1.bf16.msra.mxu0 0
    %142 = vmatprep.subr.bf16.mxu0 0
    %143 = vmatpush1.bf16.msra.mxu0 0
    %144 = vmatprep.subr.bf16.mxu0 0
    %145 = vmatpush1.bf16.msra.mxu0 0
    %146 = vmatprep.subr.bf16.mxu0 0
    %147 = vmatpush1.bf16.msra.mxu0 0
    %148 = vmatprep.subr.bf16.mxu0 0
    %149 = vmatpush1.bf16.msra.mxu0 0
    %150 = vmatprep.mubr.bf16.mxu0 0
    %151 = vmatmul.mubr.bf16.gmra.mrb[0].mxu0 %v116
    %v152 = vpop.f32.mrb[0].mxu0
    %v153 = vadd.f32 %v88, %v152
    %v154 = vpop.f32.mrb[0].mxu0
    %v155 = vpop.f32.mrb[0].mxu0
    %v156 = vadd.f32 %v88, %v155
    %v157 = vpop.f32.mrb[0].mxu0
    %158 = vdwg.mxu0
    %v159 = vmax.f32 %v153, 0.0
    %v160 = vmax.f32 %v156, 0.0
    %v161 = vxor.u32 %v153, 2147483648
    %v162 = vxor.u32 %v156, 2147483648
    %v163 = vmul.f32 %v161, 1.442695
    %v164 = vpow.pop %v163
    %v165 = vmul.f32 %v162, 1.442695
    %v166 = vpow.pop %v165
    %v167 = vadd.f32 %v164, 1.0
    %v168 = vadd.f32 %v166, 1.0
    %v169 = vrcp.pop %v167
    %v170 = vmul.f32 1.0, %v169
    %v171 = vrcp.pop %v168
    %v172 = vmul.f32 1.0, %v171
    %v173 = vsub.f32 %v159, %v72
    %v174 = vsub.f32 %v160, %v73
    %177 = vrot.lane.b32.xlu0 %v173, 64
    %v178 = vpop.permute.xlu0 %177
    %179 = vrot.lane.b32.xlu0 %v174, 64
    %v180 = vpop.permute.xlu0 %179
    %v183 = vmul.f32 %v170, %v178
    %v184 = vmul.f32 %v172, %v180
    %187 = vrot.lane.b32.xlu0 %v183, 64
    %v188 = vpop.permute.xlu0 %187
    %189 = vrot.lane.b32.xlu0 %v184, 64
    %v190 = vpop.permute.xlu0 %189
    %v193 = vadd.f32 %v72, %v188
    %v194 = vadd.f32 %v73, %v190
    %v195 = vpack.c.bf16 %v194, %v193
    %v196 = vld [vmem:[#allocation5] sm:$0xf]
    %v197 = vld [vmem:[#allocation5 + $0x4] sm:$0xf]
    %v198 = vld [vmem:[#allocation5 + $0x8] sm:$0xf]
    %v199 = vld [vmem:[#allocation5 + $0xc] sm:$0xf]
    %v200 = vld [vmem:[#allocation5 + $0x10] sm:$0xf]
    %v201 = vld [vmem:[#allocation5 + $0x14] sm:$0xf]
    %v202 = vld [vmem:[#allocation5 + $0x18] sm:$0xf]
    %v203 = vld [vmem:[#allocation5 + $0x1c] sm:$0xf]
    %v204 = vld [vmem:[%s5] sm:$0x1]
    %v206 = vlaneseq
    %v207 = vshrl.u32 %v206, 7
    %v208 = vsub.s32 0, %v207
    %v209 = vrot.slane %v204, %v208
    %v219 = vunpack.c.l.b16 %v196
    %v220 = vunpack.c.l.b16 %v197
    %v221 = vunpack.c.l.b16 %v198
    %v222 = vunpack.c.l.b16 %v199
    %v223 = vunpack.c.l.b16 %v200
    %v224 = vunpack.c.l.b16 %v201
    %v225 = vunpack.c.l.b16 %v202
    %v226 = vunpack.c.l.b16 %v203
    %v227 = vpack.c.b16 %v220, %v219
    %v228 = vpack.c.b16 %v222, %v221
    %v229 = vpack.c.b16 %v224, %v223
    %v230 = vpack.c.b16 %v226, %v225
    %v236 = vsel %vm114, %v195, 0
    %238 = vmatprep.subr.bf16.mxu0 0
    %239 = vmatpush1.bf16.msra.mxu0 %v227
    %240 = vmatprep.subr.bf16.mxu0 0
    %241 = vmatpush1.bf16.msra.mxu0 %v228
    %242 = vmatprep.subr.bf16.mxu0 0
    %243 = vmatpush1.bf16.msra.mxu0 %v229
    %244 = vmatprep.subr.bf16.mxu0 0
    %245 = vmatpush1.bf16.msra.mxu0 %v230
    %246 = vmatprep.subr.bf16.mxu0 0
    %247 = vmatpush1.bf16.msra.mxu0 0
    %248 = vmatprep.subr.bf16.mxu0 0
    %249 = vmatpush1.bf16.msra.mxu0 0
    %250 = vmatprep.subr.bf16.mxu0 0
    %251 = vmatpush1.bf16.msra.mxu0 0
    %252 = vmatprep.subr.bf16.mxu0 0
    %253 = vmatpush1.bf16.msra.mxu0 0
    %254 = vmatprep.subr.bf16.mxu0 0
    %255 = vmatpush1.bf16.msra.mxu0 0
    %256 = vmatprep.subr.bf16.mxu0 0
    %257 = vmatpush1.bf16.msra.mxu0 0
    %258 = vmatprep.subr.bf16.mxu0 0
    %259 = vmatpush1.bf16.msra.mxu0 0
    %260 = vmatprep.subr.bf16.mxu0 0
    %261 = vmatpush1.bf16.msra.mxu0 0
    %262 = vmatprep.subr.bf16.mxu0 0
    %263 = vmatpush1.bf16.msra.mxu0 0
    %264 = vmatprep.subr.bf16.mxu0 0
    %265 = vmatpush1.bf16.msra.mxu0 0
    %266 = vmatprep.subr.bf16.mxu0 0
    %267 = vmatpush1.bf16.msra.mxu0 0
    %268 = vmatprep.subr.bf16.mxu0 0
    %269 = vmatpush1.bf16.msra.mxu0 0
    %270 = vmatprep.mubr.bf16.mxu0 0
    %271 = vmatmul.mubr.bf16.gmra.mrb[0].mxu0 %v236
    %v272 = vpop.f32.mrb[0].mxu0
    %v273 = vadd.f32 %v209, %v272
    %v274 = vpop.f32.mrb[0].mxu0
    %v275 = vpop.f32.mrb[0].mxu0
    %v276 = vadd.f32 %v209, %v275
    %v277 = vpop.f32.mrb[0].mxu0
    %278 = vdwg.mxu0
    %v279 = vmax.f32 %v273, 0.0
    %v280 = vmax.f32 %v276, 0.0
    %v281 = vxor.u32 %v273, 2147483648
    %v282 = vxor.u32 %v276, 2147483648
    %v283 = vmul.f32 %v281, 1.442695
    %v284 = vpow.pop %v283
    %v285 = vmul.f32 %v282, 1.442695
    %v286 = vpow.pop %v285
    %v287 = vadd.f32 %v284, 1.0
    %v288 = vadd.f32 %v286, 1.0
    %v289 = vrcp.pop %v287
    %v290 = vmul.f32 1.0, %v289
    %v291 = vrcp.pop %v288
    %v292 = vmul.f32 1.0, %v291
    %v293 = vsub.f32 %v279, %v193
    %v294 = vsub.f32 %v280, %v194
    %297 = vrot.lane.b32.xlu0 %v293, 64
    %v298 = vpop.permute.xlu0 %297
    %299 = vrot.lane.b32.xlu0 %v294, 64
    %v300 = vpop.permute.xlu0 %299
    %v303 = vmul.f32 %v290, %v298
    %v304 = vmul.f32 %v292, %v300
    %307 = vrot.lane.b32.xlu0 %v303, 64
    %v308 = vpop.permute.xlu0 %307
    %309 = vrot.lane.b32.xlu0 %v304, 64
    %v310 = vpop.permute.xlu0 %309
    %v313 = vadd.f32 %v193, %v308
    %v314 = vadd.f32 %v194, %v310
    %v315 = vpack.c.bf16 %v314, %v313
    %v316 = vld [vmem:[%s6] sm:$0xf]
    %v317 = vld [vmem:[%s6 + $0x4] sm:$0xf]
    %v318 = vld [vmem:[%s6 + $0x8] sm:$0xf]
    %v319 = vld [vmem:[%s6 + $0xc] sm:$0xf]
    %v320 = vld [vmem:[%s6 + $0x10] sm:$0xf]
    %v321 = vld [vmem:[%s6 + $0x14] sm:$0xf]
    %v322 = vld [vmem:[%s6 + $0x18] sm:$0xf]
    %v323 = vld [vmem:[%s6 + $0x1c] sm:$0xf]
    %v324 = vld [vmem:[%s7] sm:$0x1]
    %v326 = vlaneseq
    %v327 = vshrl.u32 %v326, 7
    %v328 = vsub.s32 0, %v327
    %v329 = vrot.slane %v324, %v328
    %v339 = vunpack.c.l.b16 %v316
    %v340 = vunpack.c.l.b16 %v317
    %v341 = vunpack.c.l.b16 %v318
    %v342 = vunpack.c.l.b16 %v319
    %v343 = vunpack.c.l.b16 %v320
    %v344 = vunpack.c.l.b16 %v321
    %v345 = vunpack.c.l.b16 %v322
    %v346 = vunpack.c.l.b16 %v323
    %v347 = vpack.c.b16 %v340, %v339
    %v348 = vpack.c.b16 %v342, %v341
    %v349 = vpack.c.b16 %v344, %v343
    %v350 = vpack.c.b16 %v346, %v345
    %v356 = vsel %vm114, %v315, 0
    %358 = vmatprep.subr.bf16.mxu0 0
    %359 = vmatpush1.bf16.msra.mxu0 %v347
    %360 = vmatprep.subr.bf16.mxu0 0
    %361 = vmatpush1.bf16.msra.mxu0 %v348
    %362 = vmatprep.subr.bf16.mxu0 0
    %363 = vmatpush1.bf16.msra.mxu0 %v349
    %364 = vmatprep.subr.bf16.mxu0 0
    %365 = vmatpush1.bf16.msra.mxu0 %v350
    %366 = vmatprep.subr.bf16.mxu0 0
    %367 = vmatpush1.bf16.msra.mxu0 0
    %368 = vmatprep.subr.bf16.mxu0 0
    %369 = vmatpush1.bf16.msra.mxu0 0
    %370 = vmatprep.subr.bf16.mxu0 0
    %371 = vmatpush1.bf16.msra.mxu0 0
    %372 = vmatprep.subr.bf16.mxu0 0
    %373 = vmatpush1.bf16.msra.mxu0 0
    %374 = vmatprep.subr.bf16.mxu0 0
    %375 = vmatpush1.bf16.msra.mxu0 0
    %376 = vmatprep.subr.bf16.mxu0 0
    %377 = vmatpush1.bf16.msra.mxu0 0
    %378 = vmatprep.subr.bf16.mxu0 0
    %379 = vmatpush1.bf16.msra.mxu0 0
    %380 = vmatprep.subr.bf16.mxu0 0
    %381 = vmatpush1.bf16.msra.mxu0 0
    %382 = vmatprep.subr.bf16.mxu0 0
    %383 = vmatpush1.bf16.msra.mxu0 0
    %384 = vmatprep.subr.bf16.mxu0 0
    %385 = vmatpush1.bf16.msra.mxu0 0
    %386 = vmatprep.subr.bf16.mxu0 0
    %387 = vmatpush1.bf16.msra.mxu0 0
    %388 = vmatprep.subr.bf16.mxu0 0
    %389 = vmatpush1.bf16.msra.mxu0 0
    %390 = vmatprep.mubr.bf16.mxu0 0
    %391 = vmatmul.mubr.bf16.gmra.mrb[0].mxu0 %v356
    %v392 = vpop.f32.mrb[0].mxu0
    %v393 = vadd.f32 %v329, %v392
    %v394 = vpop.f32.mrb[0].mxu0
    %v395 = vpop.f32.mrb[0].mxu0
    %v396 = vadd.f32 %v329, %v395
    %v397 = vpop.f32.mrb[0].mxu0
    %398 = vdwg.mxu0
    %399 = vst.msk [vmem:[#allocation7] sm:$0xff] %vm71, %v393
    %400 = vst.msk [vmem:[#allocation7 + $0x8] sm:$0xff] %vm71, %v396
    // Predicated region
    $region42: #{tpu_custom_call.1} parent=1 // pred_check
      _
    $region43: #{tpu_custom_call.1} parent=1 // pred_check_branch
      %402 = sbr.rel (0) target = $region45
    $region44: #{tpu_custom_call.1} parent=1 // pred_region
      %s404 = ssub.s32 256, 256
      %405 = vsyncadd [#allocation4], %s404
      %s406 = sshll.u32 [#allocation7], 4
      %s407 = int_to_ptr.vmem [resolvable:$true] %s406
      %412 = dma.vmem_to_hbm [thread:$0]  %s407, 256, %s8, [#allocation4], 128, 128, 8
    $region45: #{tpu_custom_call.1} parent=1 // pred_fallthru
      _
    // Predicated region
    $region46: #{tpu_custom_call.1} parent=1 // pred_check
      _
    $region47: #{tpu_custom_call.1} parent=1 // pred_check_branch
      %414 = sbr.rel (0) target = $region49
    $region48: #{tpu_custom_call.1} parent=1 // pred_region
      %415 = dma.done [#allocation4], 256
    $region49: #{tpu_custom_call.1} parent=1 // pred_fallthru
      _
    %416 = vsyncpa [#allocation3], 1
    %417 = vsyncpa [#allocation6], 1
    %418 = vsyncpa [#allocation4], 1

</llo_original>
